<compile_context>
chip_gen: v6e
topology: v6e:2x2x1
jax: 0.10.0
libtpu: 0.0.40
codegen_flags: <defaults>
</compile_context>

<pallas_src>
import functools

import jax
import jax.numpy as jnp
import numpy as np
from jax.experimental import pallas as pl
from jax.experimental.pallas import tpu as pltpu


LANES = 512               # lane extent per block (>=512, multiple of 128)
MAX_TILE_SUBLANES = 256   # 256 * 512 = 128K points per grid step


def _round_up(x, m):
    return ((x + m - 1) // m) * m


def _bilinear_kernel(r_ref, z_ref, q11_ref, q21_ref, q12_ref, q22_ref, out_ref, *,
                     rgrid0, zgrid0, nr, nz, h, inv_h, inv_h2):
    """Every ref is a dense (TS, LANES) f32 tile; pure VPU elementwise work."""
    r = r_ref[...]
    z = z_ref[...]

    # Recompute the lower-left cell corner from (r, z).  This MUST use the same
    # floor+clip expression as the XLA-side gather indices in the wrapper so
    # corner values and weights agree even for edge-clamped points.
    ir0 = jnp.clip(jnp.floor((r - jnp.float32(rgrid0)) * jnp.float32(inv_h)),
                   jnp.float32(0.0), jnp.float32(nr - 2))
    iz0 = jnp.clip(jnp.floor((z - jnp.float32(zgrid0)) * jnp.float32(inv_h)),
                   jnp.float32(0.0), jnp.float32(nz - 2))
    x1 = ir0 * jnp.float32(h) + jnp.float32(rgrid0)
    y1 = iz0 * jnp.float32(h) + jnp.float32(zgrid0)

    dr1 = r - x1                       # r - x1
    dz1 = z - y1                       # z - y1
    dr2 = jnp.float32(h) - dr1         # x2 - r
    dz2 = jnp.float32(h) - dz1         # y2 - z

    acc = (q11_ref[...] * (dr2 * dz2)
           + q21_ref[...] * (dr1 * dz2)
           + q12_ref[...] * (dr2 * dz1)
           + q22_ref[...] * (dr1 * dz1))
    out_ref[...] = acc * jnp.float32(inv_h2)


@functools.partial(jax.jit, static_argnames=("rgrid0", "zgrid0", "nr", "nz", "h"))
def travel_time_forward(r, z, timetable, *, rgrid0, zgrid0, nr, nz, h):
    n = r.shape[0]
    r = r.astype(jnp.float32)
    z = z.astype(jnp.float32)
    tbl = timetable.reshape(-1).astype(jnp.float32)      # (nr*nz,)

    inv_h = float(1.0 / float(h))
    inv_h2 = float(1.0 / (float(h) * float(h)))

    # ---- tile / grid sizing: (S, LANES) sublane+lane dense point layout ----
    s_needed = max(pl.cdiv(n, LANES), 1)
    if s_needed <= 8:
        ts = 8                                           # one minimal tile
    else:
        # >= 2 grid steps for mid-size N (megacore sharding), <= 128K pts/step
        ts = min(MAX_TILE_SUBLANES, _round_up(pl.cdiv(s_needed, 2), 8))
    s_total = _round_up(s_needed, ts)
    n_pad = s_total * LANES

    if n_pad != n:
        r = jnp.pad(r, (0, n_pad - n))
        z = jnp.pad(z, (0, n_pad - n))

    # ---- index computation + 4-corner gather (glue, stays in XLA) ----
    # TODO(synk): data-dependent per-element gather has no clean portable
    # Pallas-TPU lowering; the (tiny) table gather stays in XLA, while all
    # interpolation arithmetic runs in the Pallas kernel below.
    ir0 = jnp.clip(jnp.floor((r - rgrid0) * inv_h), 0, nr - 2).astype(jnp.int32)
    iz0 = jnp.clip(jnp.floor((z - zgrid0) * inv_h), 0, nz - 2).astype(jnp.int32)
    base = ir0 * nz + iz0
    q11 = tbl[base]
    q12 = tbl[base + 1]
    q21 = tbl[base + nz]
    q22 = tbl[base + nz + 1]

    shape2d = (s_total, LANES)
    r2 = r.reshape(shape2d)
    z2 = z.reshape(shape2d)
    q11 = q11.reshape(shape2d)
    q21 = q21.reshape(shape2d)
    q12 = q12.reshape(shape2d)
    q22 = q22.reshape(shape2d)

    blk = pl.BlockSpec((ts, LANES), lambda i: (i, 0))
    out = pl.pallas_call(
        functools.partial(_bilinear_kernel,
                          rgrid0=float(rgrid0), zgrid0=float(zgrid0),
                          nr=int(nr), nz=int(nz), h=float(h),
                          inv_h=inv_h, inv_h2=inv_h2),
        out_shape=jax.ShapeDtypeStruct(shape2d, jnp.float32),
        grid=(s_total // ts,),
        in_specs=[blk, blk, blk, blk, blk, blk],
        out_specs=blk,
        compiler_params=pltpu.CompilerParams(
            dimension_semantics=("parallel",),
            vmem_limit_bytes=32 * 1024 * 1024,
        ),
        cost_estimate=pl.CostEstimate(
            flops=24 * n_pad,
            transcendentals=0,
            bytes_accessed=28 * n_pad,
        ),
    )(r2, z2, q11, q21, q12, q22)

    return out.reshape(-1)[:n]


class Test:
    """JAX/Pallas port of the PyTorch `Test` module (2-D travel-time interp)."""

    def __init__(self, timetable, rgrid0, zgrid0, nr, nz, h):
        self.timetable = jnp.asarray(timetable, jnp.float32).reshape(-1)
        self.rgrid0 = float(rgrid0)
        self.zgrid0 = float(zgrid0)
        self.nr = int(nr)
        self.nz = int(nz)
        self.h = float(h)

    def forward(self, r, z):
        return travel_time_forward(
            r, z, self.timetable,
            rgrid0=self.rgrid0, zgrid0=self.zgrid0,
            nr=self.nr, nz=self.nz, h=self.h)

    __call__ = forward


def _interp_ref(time_table, r, z, rgrid0, zgrid0, nr, nz, h):
    """Numpy reference matching adloc's _interp (bilinear on flattened table)."""
    r = np.asarray(r, np.float32)
    z = np.asarray(z, np.float32)
    tt = np.asarray(time_table, np.float32).reshape(-1)
    ir0 = np.clip(np.floor((r - rgrid0) / h), 0, nr - 2).astype(np.int64)
    iz0 = np.clip(np.floor((z - zgrid0) / h), 0, nz - 2).astype(np.int64)
    ir1 = ir0 + 1
    iz1 = iz0 + 1
    x1 = ir0 * h + rgrid0
    x2 = ir1 * h + rgrid0
    y1 = iz0 * h + zgrid0
    y2 = iz1 * h + zgrid0
    Q11 = tt[ir0 * nz + iz0]
    Q12 = tt[ir0 * nz + iz1]
    Q21 = tt[ir1 * nz + iz0]
    Q22 = tt[ir1 * nz + iz1]
    t = (1.0 / (x2 - x1) / (y2 - y1)
         * (Q11 * (x2 - r) * (y2 - z)
            + Q21 * (r - x1) * (y2 - z)
            + Q12 * (x2 - r) * (z - y1)
            + Q22 * (r - x1) * (z - y1)))
    return t.astype(np.float32)


if __name__ == "__main__":
    # Small deterministic example: 21 x 21 grid, spacing 1 km.
    nr, nz = 21, 21
    h = 1.0
    rgrid0, zgrid0 = 0.0, 0.0
    vel = 6.0

    rg = np.arange(nr, dtype=np.float32) * h + rgrid0
    zg = np.arange(nz, dtype=np.float32) * h + zgrid0
    timetable_np = (np.sqrt(rg[:, None] ** 2 + zg[None, :] ** 2) / vel
                    ).astype(np.float32).reshape(-1)                 # (nr*nz,)

    model = Test(timetable_np, rgrid0, zgrid0, nr, nz, h)
    key = jax.random.PRNGKey(0)

    # 1) small: 20 query points (single tile path)
    kr, kz, key = jax.random.split(key, 3)
    r = jax.random.uniform(kr, (20,), jnp.float32, 0.1, (nr - 1) * h - 0.1)
    z = jax.random.uniform(kz, (20,), jnp.float32, 0.1, (nz - 1) * h - 0.1)
    tt = model(r, z)
    jax.block_until_ready(tt)
    ref = _interp_ref(timetable_np, np.asarray(r), np.asarray(z),
                      rgrid0, zgrid0, nr, nz, h)
    np.testing.assert_allclose(np.asarray(tt), ref, rtol=1e-5, atol=1e-5)

    # 2) mid-size: 9000 query points (multi-step grid / megacore path)
    kr, kz, key = jax.random.split(key, 3)
    r2 = jax.random.uniform(kr, (9000,), jnp.float32, 0.1, (nr - 1) * h - 0.1)
    z2 = jax.random.uniform(kz, (9000,), jnp.float32, 0.1, (nz - 1) * h - 0.1)
    tt2 = model(r2, z2)
    jax.block_until_ready(tt2)
    ref2 = _interp_ref(timetable_np, np.asarray(r2), np.asarray(z2),
                       rgrid0, zgrid0, nr, nz, h)
    np.testing.assert_allclose(np.asarray(tt2), ref2, rtol=1e-5, atol=1e-5)

    print("KERNEL_OK")
</pallas_src>

<mosaic_0001>
module attributes {stable_mosaic.version = 11 : i64} {
  func.func @_bilinear_kernel(%arg0: i32, %arg1: memref<8x512xf32, #tpu.memory_space<vmem>>, %arg2: memref<8x512xf32, #tpu.memory_space<vmem>>, %arg3: memref<8x512xf32, #tpu.memory_space<vmem>>, %arg4: memref<8x512xf32, #tpu.memory_space<vmem>>, %arg5: memref<8x512xf32, #tpu.memory_space<vmem>>, %arg6: memref<8x512xf32, #tpu.memory_space<vmem>>, %arg7: memref<8x512xf32, #tpu.memory_space<vmem>>) attributes {dimension_semantics = [#tpu.dimension_semantics<parallel>], iteration_bounds = array<i64: 1>, scalar_prefetch = 0 : i64, scratch_operands = 0 : i64, tpu.core_type = #tpu.core_type<tc>, window_params = [{transform_indices = @transform_0, window_bounds = array<i64: 8, 512>}, {transform_indices = @transform_1, window_bounds = array<i64: 8, 512>}, {transform_indices = @transform_2, window_bounds = array<i64: 8, 512>}, {transform_indices = @transform_3, window_bounds = array<i64: 8, 512>}, {transform_indices = @transform_4, window_bounds = array<i64: 8, 512>}, {transform_indices = @transform_5, window_bounds = array<i64: 8, 512>}, {transform_indices = @transform_6, window_bounds = array<i64: 8, 512>}]} {
    %c0 = arith.constant 0 : index
    %c0_0 = arith.constant 0 : index
    %0 = vector.load %arg1[%c0, %c0_0] : memref<8x512xf32, #tpu.memory_space<vmem>>, vector<8x512xf32>
    %c0_1 = arith.constant 0 : index
    %c0_2 = arith.constant 0 : index
    %1 = vector.load %arg2[%c0_1, %c0_2] : memref<8x512xf32, #tpu.memory_space<vmem>>, vector<8x512xf32>
    %cst = arith.constant 0.000000e+00 : f32
    %2 = vector.broadcast %cst : f32 to vector<8x512xf32>
    %3 = arith.subf %0, %2 : vector<8x512xf32>
    %cst_3 = arith.constant 1.000000e+00 : f32
    %4 = vector.broadcast %cst_3 : f32 to vector<8x512xf32>
    %5 = arith.mulf %3, %4 : vector<8x512xf32>
    %6 = math.floor %5 : vector<8x512xf32>
    %cst_4 = arith.constant 0.000000e+00 : f32
    %cst_5 = arith.constant 1.900000e+01 : f32
    %7 = vector.broadcast %cst_4 : f32 to vector<8x512xf32>
    %8 = arith.maximumf %7, %6 : vector<8x512xf32>
    %9 = vector.broadcast %cst_5 : f32 to vector<8x512xf32>
    %10 = arith.minimumf %9, %8 : vector<8x512xf32>
    %cst_6 = arith.constant 0.000000e+00 : f32
    %11 = vector.broadcast %cst_6 : f32 to vector<8x512xf32>
    %12 = arith.subf %1, %11 : vector<8x512xf32>
    %cst_7 = arith.constant 1.000000e+00 : f32
    %13 = vector.broadcast %cst_7 : f32 to vector<8x512xf32>
    %14 = arith.mulf %12, %13 : vector<8x512xf32>
    %15 = math.floor %14 : vector<8x512xf32>
    %cst_8 = arith.constant 0.000000e+00 : f32
    %cst_9 = arith.constant 1.900000e+01 : f32
    %16 = vector.broadcast %cst_8 : f32 to vector<8x512xf32>
    %17 = arith.maximumf %16, %15 : vector<8x512xf32>
    %18 = vector.broadcast %cst_9 : f32 to vector<8x512xf32>
    %19 = arith.minimumf %18, %17 : vector<8x512xf32>
    %cst_10 = arith.constant 1.000000e+00 : f32
    %20 = vector.broadcast %cst_10 : f32 to vector<8x512xf32>
    %21 = arith.mulf %10, %20 : vector<8x512xf32>
    %cst_11 = arith.constant 0.000000e+00 : f32
    %22 = vector.broadcast %cst_11 : f32 to vector<8x512xf32>
    %23 = arith.addf %21, %22 : vector<8x512xf32>
    %cst_12 = arith.constant 1.000000e+00 : f32
    %24 = vector.broadcast %cst_12 : f32 to vector<8x512xf32>
    %25 = arith.mulf %19, %24 : vector<8x512xf32>
    %cst_13 = arith.constant 0.000000e+00 : f32
    %26 = vector.broadcast %cst_13 : f32 to vector<8x512xf32>
    %27 = arith.addf %25, %26 : vector<8x512xf32>
    %28 = arith.subf %0, %23 : vector<8x512xf32>
    %29 = arith.subf %1, %27 : vector<8x512xf32>
    %cst_14 = arith.constant 1.000000e+00 : f32
    %30 = vector.broadcast %cst_14 : f32 to vector<8x512xf32>
    %31 = arith.subf %30, %28 : vector<8x512xf32>
    %cst_15 = arith.constant 1.000000e+00 : f32
    %32 = vector.broadcast %cst_15 : f32 to vector<8x512xf32>
    %33 = arith.subf %32, %29 : vector<8x512xf32>
    %c0_16 = arith.constant 0 : index
    %c0_17 = arith.constant 0 : index
    %34 = vector.load %arg3[%c0_16, %c0_17] : memref<8x512xf32, #tpu.memory_space<vmem>>, vector<8x512xf32>
    %35 = arith.mulf %31, %33 : vector<8x512xf32>
    %36 = arith.mulf %34, %35 : vector<8x512xf32>
    %c0_18 = arith.constant 0 : index
    %c0_19 = arith.constant 0 : index
    %37 = vector.load %arg4[%c0_18, %c0_19] : memref<8x512xf32, #tpu.memory_space<vmem>>, vector<8x512xf32>
    %38 = arith.mulf %28, %33 : vector<8x512xf32>
    %39 = arith.mulf %37, %38 : vector<8x512xf32>
    %40 = arith.addf %36, %39 : vector<8x512xf32>
    %c0_20 = arith.constant 0 : index
    %c0_21 = arith.constant 0 : index
    %41 = vector.load %arg5[%c0_20, %c0_21] : memref<8x512xf32, #tpu.memory_space<vmem>>, vector<8x512xf32>
    %42 = arith.mulf %31, %29 : vector<8x512xf32>
    %43 = arith.mulf %41, %42 : vector<8x512xf32>
    %44 = arith.addf %40, %43 : vector<8x512xf32>
    %c0_22 = arith.constant 0 : index
    %c0_23 = arith.constant 0 : index
    %45 = vector.load %arg6[%c0_22, %c0_23] : memref<8x512xf32, #tpu.memory_space<vmem>>, vector<8x512xf32>
    %46 = arith.mulf %28, %29 : vector<8x512xf32>
    %47 = arith.mulf %45, %46 : vector<8x512xf32>
    %48 = arith.addf %44, %47 : vector<8x512xf32>
    %cst_24 = arith.constant 1.000000e+00 : f32
    %49 = vector.broadcast %cst_24 : f32 to vector<8x512xf32>
    %50 = arith.mulf %48, %49 : vector<8x512xf32>
    %c0_25 = arith.constant 0 : index
    %c0_26 = arith.constant 0 : index
    %51 = vector.load %arg7[%c0_25, %c0_26] : memref<8x512xf32, #tpu.memory_space<vmem>>, vector<8x512xf32>
    tpu.vector_store %arg7[%c0_25, %c0_26], %50 {strides = array<i32>} : memref<8x512xf32, #tpu.memory_space<vmem>>, vector<8x512xf32>,
    return
  }
  func.func @transform_0(%arg0: i32) -> (i32, i32) {
    %c0_i32 = arith.constant 0 : i32
    %c0_i32_0 = arith.constant 0 : i32
    return %arg0, %c0_i32 : i32, i32
  }
  func.func @transform_1(%arg0: i32) -> (i32, i32) {
    %c0_i32 = arith.constant 0 : i32
    %c0_i32_0 = arith.constant 0 : i32
    return %arg0, %c0_i32 : i32, i32
  }
  func.func @transform_2(%arg0: i32) -> (i32, i32) {
    %c0_i32 = arith.constant 0 : i32
    %c0_i32_0 = arith.constant 0 : i32
    return %arg0, %c0_i32 : i32, i32
  }
  func.func @transform_3(%arg0: i32) -> (i32, i32) {
    %c0_i32 = arith.constant 0 : i32
    %c0_i32_0 = arith.constant 0 : i32
    return %arg0, %c0_i32 : i32, i32
  }
  func.func @transform_4(%arg0: i32) -> (i32, i32) {
    %c0_i32 = arith.constant 0 : i32
    %c0_i32_0 = arith.constant 0 : i32
    return %arg0, %c0_i32 : i32, i32
  }
  func.func @transform_5(%arg0: i32) -> (i32, i32) {
    %c0_i32 = arith.constant 0 : i32
    %c0_i32_0 = arith.constant 0 : i32
    return %arg0, %c0_i32 : i32, i32
  }
  func.func @transform_6(%arg0: i32) -> (i32, i32) {
    %c0_i32 = arith.constant 0 : i32
    %c0_i32_0 = arith.constant 0 : i32
    return %arg0, %c0_i32 : i32, i32
  }
}

</mosaic_0001>

<llo_original>
// kernel: travel_time_forward.1
$region0: #{travel_time_forward.1}
  #allocation0 [shape = 'u32[]', space=smem, size = 0x4, offset = 0x4, fixed_abs, tag = 'smem constant byte address 0x4 - core index']
  #allocation1 [shape = 'u32[144,128]{1,0:T(1,128)}', space=vmem, size = 0x12000, scoped, tag = 'internal scratch']
  %s0 = inlined_call_operand.vmem [shape: f32[8,512], index: 0, kind: input, shape index: {}]
  %s1 = inlined_call_operand.vmem [shape: f32[8,512], index: 1, kind: input, shape index: {}]
  %s2 = inlined_call_operand.vmem [shape: f32[8,512], index: 2, kind: input, shape index: {}]
  %s3 = inlined_call_operand.vmem [shape: f32[8,512], index: 3, kind: input, shape index: {}]
  %s4 = inlined_call_operand.vmem [shape: f32[8,512], index: 4, kind: input, shape index: {}]
  %s5 = inlined_call_operand.vmem [shape: f32[8,512], index: 5, kind: input, shape index: {}]
  %s6 = inlined_call_operand.vmem [shape: f32[8,512], index: 6, kind: output, shape index: {}]
  %s7 = sld [smem:[#allocation0]]
  $region34: #{travel_time_forward.1} parent=0
    _
  %s9 = ssub.s32 1, %s7
  %s10 = scalar_select 0, %s9, %s7
  // Predicated region
  $region2: #{travel_time_forward.1} parent=0 // pred_check
    _
  $region3: #{travel_time_forward.1} parent=0 // pred_check_branch
    %12 = sbr.rel (0) target = $region5
  $region4: #{travel_time_forward.1} parent=0 // pred_region
    _
  $region5: #{travel_time_forward.1} parent=0 // pred_fallthru
    _
  // Predicated region
  $region6: #{travel_time_forward.1} parent=0 // pred_check
    _
  $region7: #{travel_time_forward.1} parent=0 // pred_check_branch
    %14 = sbr.rel (0) target = $region9
  $region8: #{travel_time_forward.1} parent=0 // pred_region
    _
  $region9: #{travel_time_forward.1} parent=0 // pred_fallthru
    _
  // Predicated region
  $region10: #{travel_time_forward.1} parent=0 // pred_check
    _
  $region11: #{travel_time_forward.1} parent=0 // pred_check_branch
    %16 = sbr.rel (0) target = $region13
  $region12: #{travel_time_forward.1} parent=0 // pred_region
    _
  $region13: #{travel_time_forward.1} parent=0 // pred_fallthru
    _
  // Predicated region
  $region14: #{travel_time_forward.1} parent=0 // pred_check
    _
  $region15: #{travel_time_forward.1} parent=0 // pred_check_branch
    %18 = sbr.rel (0) target = $region17
  $region16: #{travel_time_forward.1} parent=0 // pred_region
    _
  $region17: #{travel_time_forward.1} parent=0 // pred_fallthru
    _
  // Predicated region
  $region18: #{travel_time_forward.1} parent=0 // pred_check
    _
  $region19: #{travel_time_forward.1} parent=0 // pred_check_branch
    %20 = sbr.rel (0) target = $region21
  $region20: #{travel_time_forward.1} parent=0 // pred_region
    _
  $region21: #{travel_time_forward.1} parent=0 // pred_fallthru
    _
  // Predicated region
  $region22: #{travel_time_forward.1} parent=0 // pred_check
    _
  $region23: #{travel_time_forward.1} parent=0 // pred_check_branch
    %22 = sbr.rel (0) target = $region25
  $region24: #{travel_time_forward.1} parent=0 // pred_region
    _
  $region25: #{travel_time_forward.1} parent=0 // pred_fallthru
    _
  %v23 = vld [vmem:[%s0] sm:$0xff]
  %v24 = vld [vmem:[%s0 + $0x8] sm:$0xff]
  %v25 = vld [vmem:[%s0 + $0x10] sm:$0xff]
  %v26 = vld [vmem:[%s0 + $0x18] sm:$0xff]
  %v27 = vld [vmem:[%s1] sm:$0xff]
  %v28 = vld [vmem:[%s1 + $0x8] sm:$0xff]
  %v29 = vld [vmem:[%s1 + $0x10] sm:$0xff]
  %v30 = vld [vmem:[%s1 + $0x18] sm:$0xff]
  %v31 = vfloor.f32 %v23
  %v32 = vfloor.f32 %v24
  %v33 = vfloor.f32 %v25
  %v34 = vfloor.f32 %v26
  %v35 = vmax.f32 %v31, 0.0
  %v36 = vmax.f32 %v32, 0.0
  %v37 = vmax.f32 %v33, 0.0
  %v38 = vmax.f32 %v34, 0.0
  %v39 = vmin.f32 %v35, 19.0
  %v40 = vmin.f32 %v36, 19.0
  %v41 = vmin.f32 %v37, 19.0
  %v42 = vmin.f32 %v38, 19.0
  %v43 = vfloor.f32 %v27
  %v44 = vfloor.f32 %v28
  %v45 = vfloor.f32 %v29
  %v46 = vfloor.f32 %v30
  %v47 = vmax.f32 %v43, 0.0
  %v48 = vmax.f32 %v44, 0.0
  %v49 = vmax.f32 %v45, 0.0
  %v50 = vmax.f32 %v46, 0.0
  %v51 = vmin.f32 %v47, 19.0
  %v52 = vmin.f32 %v48, 19.0
  %v53 = vmin.f32 %v49, 19.0
  %v54 = vmin.f32 %v50, 19.0
  %v55 = vadd.f32 %v39, 0.0
  %v56 = vadd.f32 %v40, 0.0
  %v57 = vadd.f32 %v41, 0.0
  %v58 = vadd.f32 %v42, 0.0
  %v59 = vadd.f32 %v51, 0.0
  %v60 = vadd.f32 %v52, 0.0
  %v61 = vadd.f32 %v53, 0.0
  %v62 = vadd.f32 %v54, 0.0
  %v63 = vsub.f32 %v23, %v55
  %v64 = vsub.f32 %v24, %v56
  %v65 = vsub.f32 %v25, %v57
  %v66 = vsub.f32 %v26, %v58
  %v67 = vsub.f32 %v27, %v59
  %v68 = vsub.f32 %v28, %v60
  %v69 = vsub.f32 %v29, %v61
  %v70 = vsub.f32 %v30, %v62
  %v71 = vsub.f32 1.0, %v63
  %v72 = vsub.f32 1.0, %v64
  %v73 = vsub.f32 1.0, %v65
  %v74 = vsub.f32 1.0, %v66
  %v75 = vsub.f32 1.0, %v67
  %v76 = vsub.f32 1.0, %v68
  %v77 = vsub.f32 1.0, %v69
  %v78 = vsub.f32 1.0, %v70
  %v79 = vld [vmem:[%s2] sm:$0xff]
  %v80 = vld [vmem:[%s2 + $0x8] sm:$0xff]
  %v81 = vld [vmem:[%s2 + $0x10] sm:$0xff]
  %v82 = vld [vmem:[%s2 + $0x18] sm:$0xff]
  %v83 = vmul.f32 %v71, %v75
  %v84 = vmul.f32 %v72, %v76
  %v85 = vmul.f32 %v73, %v77
  %v86 = vmul.f32 %v74, %v78
  %v87 = vmul.f32 %v79, %v83
  %v88 = vmul.f32 %v80, %v84
  %v89 = vmul.f32 %v81, %v85
  %v90 = vmul.f32 %v82, %v86
  %v91 = vld [vmem:[%s3] sm:$0xff]
  %v92 = vld [vmem:[%s3 + $0x8] sm:$0xff]
  %v93 = vld [vmem:[%s3 + $0x10] sm:$0xff]
  %v94 = vld [vmem:[%s3 + $0x18] sm:$0xff]
  %v95 = vmul.f32 %v63, %v75
  %v96 = vmul.f32 %v64, %v76
  %v97 = vmul.f32 %v65, %v77
  %v98 = vmul.f32 %v66, %v78
  %v99 = vmul.f32 %v91, %v95
  %v100 = vmul.f32 %v92, %v96
  %v101 = vmul.f32 %v93, %v97
  %v102 = vmul.f32 %v94, %v98
  %v103 = vadd.f32 %v87, %v99
  %v104 = vadd.f32 %v88, %v100
  %v105 = vadd.f32 %v89, %v101
  %v106 = vadd.f32 %v90, %v102
  %v107 = vld [vmem:[%s4] sm:$0xff]
  %v108 = vld [vmem:[%s4 + $0x8] sm:$0xff]
  %v109 = vld [vmem:[%s4 + $0x10] sm:$0xff]
  %v110 = vld [vmem:[%s4 + $0x18] sm:$0xff]
  %v111 = vmul.f32 %v71, %v67
  %v112 = vmul.f32 %v72, %v68
  %v113 = vmul.f32 %v73, %v69
  %v114 = vmul.f32 %v74, %v70
  %v115 = vmul.f32 %v107, %v111
  %v116 = vmul.f32 %v108, %v112
  %v117 = vmul.f32 %v109, %v113
  %v118 = vmul.f32 %v110, %v114
  %v119 = vadd.f32 %v103, %v115
  %v120 = vadd.f32 %v104, %v116
  %v121 = vadd.f32 %v105, %v117
  %v122 = vadd.f32 %v106, %v118
  %v123 = vld [vmem:[%s5] sm:$0xff]
  %v124 = vld [vmem:[%s5 + $0x8] sm:$0xff]
  %v125 = vld [vmem:[%s5 + $0x10] sm:$0xff]
  %v126 = vld [vmem:[%s5 + $0x18] sm:$0xff]
  %v127 = vmul.f32 %v63, %v67
  %v128 = vmul.f32 %v64, %v68
  %v129 = vmul.f32 %v65, %v69
  %v130 = vmul.f32 %v66, %v70
  %v131 = vmul.f32 %v123, %v127
  %v132 = vmul.f32 %v124, %v128
  %v133 = vmul.f32 %v125, %v129
  %v134 = vmul.f32 %v126, %v130
  %v135 = vadd.f32 %v119, %v131
  %v136 = vadd.f32 %v120, %v132
  %v137 = vadd.f32 %v121, %v133
  %v138 = vadd.f32 %v122, %v134
  %139 = vst [vmem:[%s6] sm:$0xff] %v135
  %140 = vst [vmem:[%s6 + $0x8] sm:$0xff] %v136
  %141 = vst [vmem:[%s6 + $0x10] sm:$0xff] %v137
  %142 = vst [vmem:[%s6 + $0x18] sm:$0xff] %v138
  // Predicated region
  $region26: #{travel_time_forward.1} parent=0 // pred_check
    _
  $region27: #{travel_time_forward.1} parent=0 // pred_check_branch
    %144 = sbr.rel (0) target = $region29
  $region28: #{travel_time_forward.1} parent=0 // pred_region
    _
  $region29: #{travel_time_forward.1} parent=0 // pred_fallthru
    _
  // Predicated region
  $region30: #{travel_time_forward.1} parent=0 // pred_check
    _
  $region31: #{travel_time_forward.1} parent=0 // pred_check_branch
    %146 = sbr.rel (0) target = $region33
  $region32: #{travel_time_forward.1} parent=0 // pred_region
    _
  $region33: #{travel_time_forward.1} parent=0 // pred_fallthru
    _

</llo_original>
